<compile_context>
chip_gen: v5e
topology: v5e:2x2
jax: 0.10.0
libtpu: 0.0.40
codegen_flags: <defaults>
</compile_context>

<pallas_src>
import jax
import jax.numpy as jnp
from jax.experimental import pallas as pl
from jax.experimental.pallas import tpu as pltpu


def _mlp_kernel(w1_ref, b1_ref, w2_ref, b2_ref, x_ref, o_ref):
    """One batch tile.

    x_ref : (3, TB)  VMEM  -- features on sublanes, batch on lanes.
    o_ref : (1, TB)  VMEM
    w1_ref: (4, 3)   SMEM   b1_ref: (4,) SMEM
    w2_ref: (1, 4)   SMEM   b2_ref: (1,) SMEM
    """
    x = x_ref[...]                                        # (3, TB) f32
    n = x.shape[1]

    # fc2 accumulator starts at its bias (scalar broadcast across lanes).
    y = jnp.zeros((1, n), jnp.float32) + b2_ref[0]

    # fc1 + fc2 as fully unrolled VPU multiply-adds (no MXU use at all).
    for j in range(4):                                    # hidden units
        h = jnp.zeros((1, n), jnp.float32) + b1_ref[j]
        for i in range(3):                                # input features
            h = h + w1_ref[j, i] * x[i:i + 1, :]
        h = jax.nn.sigmoid(h)                             # EUP
        y = y + w2_ref[0, j] * h

    o_ref[...] = jax.nn.sigmoid(y).astype(o_ref.dtype)    # lane-dense store


def _round_up(n, m):
    return ((n + m - 1) // m) * m


def net_forward(x, w1, b1, w2, b2, *, block_b=512):
    """Forward pass of `Net`: sigmoid(sigmoid(x @ w1.T + b1) @ w2.T + b2).

    x : (B, 3) float32
    w1: (4, 3), b1: (4,)   -- fc1 params, PyTorch layout (out, in)
    w2: (1, 4), b2: (1,)   -- fc2 params
    returns (B, 1) float32
    """
    B = x.shape[0]
    lane = 128
    tb = min(block_b, _round_up(B, lane))    # lane tile: multiple of 128
    Bp = _round_up(B, tb)                    # padded batch (divisible by tb)
    nb = Bp // tb

    # Lane-dense layout: (B, 3) -> (3, Bp), batch on the lane axis.
    xT = jnp.zeros((3, Bp), jnp.float32).at[:, :B].set(x.astype(jnp.float32).T)

    smem = pl.BlockSpec(memory_space=pltpu.MemorySpace.SMEM)
    grid_spec = pltpu.PrefetchScalarGridSpec(
        num_scalar_prefetch=0,
        grid=(nb,),
        in_specs=[
            smem,                                         # w1 (4, 3)
            smem,                                         # b1 (4,)
            smem,                                         # w2 (1, 4)
            smem,                                         # b2 (1,)
            pl.BlockSpec((3, tb), lambda i: (0, i)),      # x tile (3, TB)
        ],
        out_specs=pl.BlockSpec((1, tb), lambda i: (0, i)),
    )

    out = pl.pallas_call(
        _mlp_kernel,
        out_shape=jax.ShapeDtypeStruct((1, Bp), jnp.float32),
        grid_spec=grid_spec,
        compiler_params=pltpu.CompilerParams(
            dimension_semantics=("parallel",),            # megacore on v7x
        ),
    )(
        w1.astype(jnp.float32),
        b1.astype(jnp.float32),
        w2.astype(jnp.float32),
        b2.astype(jnp.float32),
        xT,
    )
    return out[:, :B].T                                   # (B, 1)


def _init_params(key):
    # Deterministic init mimicking PyTorch's default Linear init:
    # U(-1/sqrt(fan_in), 1/sqrt(fan_in)).
    k1, k2, k3, k4 = jax.random.split(key, 4)
    bound1 = 1.0 / jnp.sqrt(3.0)
    bound2 = 1.0 / jnp.sqrt(4.0)
    w1 = jax.random.uniform(k1, (4, 3), jnp.float32, -bound1, bound1)
    b1 = jax.random.uniform(k2, (4,), jnp.float32, -bound1, bound1)
    w2 = jax.random.uniform(k3, (1, 4), jnp.float32, -bound2, bound2)
    b2 = jax.random.uniform(k4, (1,), jnp.float32, -bound2, bound2)
    return w1, b1, w2, b2


if __name__ == "__main__":
    key = jax.random.PRNGKey(0)
    k_params, k_x = jax.random.split(key)
    w1, b1, w2, b2 = _init_params(k_params)

    # Small batch of 3-bit "multi-XOR" style inputs (batch=8, features=3).
    B = 8
    x = jax.random.bernoulli(k_x, 0.5, (B, 3)).astype(jnp.float32)

    out = jax.block_until_ready(net_forward(x, w1, b1, w2, b2))

    # Pure-JAX reference check of the same forward pass.
    ref = jax.nn.sigmoid(jax.nn.sigmoid(x @ w1.T + b1) @ w2.T + b2)
    assert out.shape == (B, 1)
    assert jnp.allclose(out, ref, atol=1e-5), "mismatch vs reference"

    print("KERNEL_OK")
</pallas_src>

<mosaic_0001>
module attributes {stable_mosaic.version = 11 : i64} {
  func.func @_mlp_kernel(%arg0: i32, %arg1: memref<4x3xf32, #tpu.memory_space<smem>>, %arg2: memref<4xf32, #tpu.memory_space<smem>>, %arg3: memref<1x4xf32, #tpu.memory_space<smem>>, %arg4: memref<1xf32, #tpu.memory_space<smem>>, %arg5: memref<3x128xf32, #tpu.memory_space<vmem>>, %arg6: memref<1x128xf32, #tpu.memory_space<vmem>>) attributes {dimension_semantics = [#tpu.dimension_semantics<parallel>], iteration_bounds = array<i64: 1>, scalar_prefetch = 0 : i64, scratch_operands = 0 : i64, tpu.core_type = #tpu.core_type<tc>, window_params = [{transform_indices = @transform_0, window_bounds = array<i64: 4, 3>}, {transform_indices = @transform_1, window_bounds = array<i64: 4>}, {transform_indices = @transform_2, window_bounds = array<i64: 1, 4>}, {transform_indices = @transform_3, window_bounds = array<i64: 1>}, {transform_indices = @transform_4, window_bounds = array<i64: 3, 128>}, {transform_indices = @transform_5, window_bounds = array<i64: 1, 128>}]} {
    %c0 = arith.constant 0 : index
    %c0_0 = arith.constant 0 : index
    %0 = vector.load %arg5[%c0, %c0_0] : memref<3x128xf32, #tpu.memory_space<vmem>>, vector<3x128xf32>
    %cst = arith.constant 0.000000e+00 : f32
    %1 = vector.broadcast %cst : f32 to vector<1x128xf32>
    %c0_1 = arith.constant 0 : index
    %2 = memref.load %arg4[%c0_1] : memref<1xf32, #tpu.memory_space<smem>>
    %3 = vector.broadcast %2 : f32 to vector<1x128xf32>
    %4 = arith.addf %1, %3 : vector<1x128xf32>
    %cst_2 = arith.constant 0.000000e+00 : f32
    %5 = vector.broadcast %cst_2 : f32 to vector<1x128xf32>
    %c0_3 = arith.constant 0 : index
    %6 = memref.load %arg2[%c0_3] : memref<4xf32, #tpu.memory_space<smem>>
    %7 = vector.broadcast %6 : f32 to vector<1x128xf32>
    %8 = arith.addf %5, %7 : vector<1x128xf32>
    %c0_4 = arith.constant 0 : index
    %c0_5 = arith.constant 0 : index
    %9 = memref.load %arg1[%c0_4, %c0_5] : memref<4x3xf32, #tpu.memory_space<smem>>
    %10 = vector.extract_strided_slice %0 {offsets = [0, 0], sizes = [1, 128], strides = [1, 1]} : vector<3x128xf32> to vector<1x128xf32>
    %11 = vector.broadcast %9 : f32 to vector<1x128xf32>
    %12 = arith.mulf %11, %10 : vector<1x128xf32>
    %13 = arith.addf %8, %12 : vector<1x128xf32>
    %c0_6 = arith.constant 0 : index
    %c1 = arith.constant 1 : index
    %14 = memref.load %arg1[%c0_6, %c1] : memref<4x3xf32, #tpu.memory_space<smem>>
    %15 = vector.extract_strided_slice %0 {offsets = [1, 0], sizes = [1, 128], strides = [1, 1]} : vector<3x128xf32> to vector<1x128xf32>
    %16 = vector.broadcast %14 : f32 to vector<1x128xf32>
    %17 = arith.mulf %16, %15 : vector<1x128xf32>
    %18 = arith.addf %13, %17 : vector<1x128xf32>
    %c0_7 = arith.constant 0 : index
    %c2 = arith.constant 2 : index
    %19 = memref.load %arg1[%c0_7, %c2] : memref<4x3xf32, #tpu.memory_space<smem>>
    %20 = vector.extract_strided_slice %0 {offsets = [2, 0], sizes = [1, 128], strides = [1, 1]} : vector<3x128xf32> to vector<1x128xf32>
    %21 = vector.broadcast %19 : f32 to vector<1x128xf32>
    %22 = arith.mulf %21, %20 : vector<1x128xf32>
    %23 = arith.addf %18, %22 : vector<1x128xf32>
    %24 = arith.negf %23 : vector<1x128xf32>
    %25 = math.exp %24 : vector<1x128xf32>
    %cst_8 = arith.constant 1.000000e+00 : f32
    %26 = vector.broadcast %cst_8 : f32 to vector<1x128xf32>
    %27 = arith.addf %26, %25 : vector<1x128xf32>
    %28 = arith.divf %26, %27 : vector<1x128xf32>
    %c0_9 = arith.constant 0 : index
    %c0_10 = arith.constant 0 : index
    %29 = memref.load %arg3[%c0_9, %c0_10] : memref<1x4xf32, #tpu.memory_space<smem>>
    %30 = vector.broadcast %29 : f32 to vector<1x128xf32>
    %31 = arith.mulf %30, %28 : vector<1x128xf32>
    %32 = arith.addf %4, %31 : vector<1x128xf32>
    %cst_11 = arith.constant 0.000000e+00 : f32
    %33 = vector.broadcast %cst_11 : f32 to vector<1x128xf32>
    %c1_12 = arith.constant 1 : index
    %34 = memref.load %arg2[%c1_12] : memref<4xf32, #tpu.memory_space<smem>>
    %35 = vector.broadcast %34 : f32 to vector<1x128xf32>
    %36 = arith.addf %33, %35 : vector<1x128xf32>
    %c1_13 = arith.constant 1 : index
    %c0_14 = arith.constant 0 : index
    %37 = memref.load %arg1[%c1_13, %c0_14] : memref<4x3xf32, #tpu.memory_space<smem>>
    %38 = vector.extract_strided_slice %0 {offsets = [0, 0], sizes = [1, 128], strides = [1, 1]} : vector<3x128xf32> to vector<1x128xf32>
    %39 = vector.broadcast %37 : f32 to vector<1x128xf32>
    %40 = arith.mulf %39, %38 : vector<1x128xf32>
    %41 = arith.addf %36, %40 : vector<1x128xf32>
    %c1_15 = arith.constant 1 : index
    %c1_16 = arith.constant 1 : index
    %42 = memref.load %arg1[%c1_15, %c1_16] : memref<4x3xf32, #tpu.memory_space<smem>>
    %43 = vector.extract_strided_slice %0 {offsets = [1, 0], sizes = [1, 128], strides = [1, 1]} : vector<3x128xf32> to vector<1x128xf32>
    %44 = vector.broadcast %42 : f32 to vector<1x128xf32>
    %45 = arith.mulf %44, %43 : vector<1x128xf32>
    %46 = arith.addf %41, %45 : vector<1x128xf32>
    %c1_17 = arith.constant 1 : index
    %c2_18 = arith.constant 2 : index
    %47 = memref.load %arg1[%c1_17, %c2_18] : memref<4x3xf32, #tpu.memory_space<smem>>
    %48 = vector.extract_strided_slice %0 {offsets = [2, 0], sizes = [1, 128], strides = [1, 1]} : vector<3x128xf32> to vector<1x128xf32>
    %49 = vector.broadcast %47 : f32 to vector<1x128xf32>
    %50 = arith.mulf %49, %48 : vector<1x128xf32>
    %51 = arith.addf %46, %50 : vector<1x128xf32>
    %52 = arith.negf %51 : vector<1x128xf32>
    %53 = math.exp %52 : vector<1x128xf32>
    %cst_19 = arith.constant 1.000000e+00 : f32
    %54 = vector.broadcast %cst_19 : f32 to vector<1x128xf32>
    %55 = arith.addf %54, %53 : vector<1x128xf32>
    %56 = arith.divf %54, %55 : vector<1x128xf32>
    %c0_20 = arith.constant 0 : index
    %c1_21 = arith.constant 1 : index
    %57 = memref.load %arg3[%c0_20, %c1_21] : memref<1x4xf32, #tpu.memory_space<smem>>
    %58 = vector.broadcast %57 : f32 to vector<1x128xf32>
    %59 = arith.mulf %58, %56 : vector<1x128xf32>
    %60 = arith.addf %32, %59 : vector<1x128xf32>
    %cst_22 = arith.constant 0.000000e+00 : f32
    %61 = vector.broadcast %cst_22 : f32 to vector<1x128xf32>
    %c2_23 = arith.constant 2 : index
    %62 = memref.load %arg2[%c2_23] : memref<4xf32, #tpu.memory_space<smem>>
    %63 = vector.broadcast %62 : f32 to vector<1x128xf32>
    %64 = arith.addf %61, %63 : vector<1x128xf32>
    %c2_24 = arith.constant 2 : index
    %c0_25 = arith.constant 0 : index
    %65 = memref.load %arg1[%c2_24, %c0_25] : memref<4x3xf32, #tpu.memory_space<smem>>
    %66 = vector.extract_strided_slice %0 {offsets = [0, 0], sizes = [1, 128], strides = [1, 1]} : vector<3x128xf32> to vector<1x128xf32>
    %67 = vector.broadcast %65 : f32 to vector<1x128xf32>
    %68 = arith.mulf %67, %66 : vector<1x128xf32>
    %69 = arith.addf %64, %68 : vector<1x128xf32>
    %c2_26 = arith.constant 2 : index
    %c1_27 = arith.constant 1 : index
    %70 = memref.load %arg1[%c2_26, %c1_27] : memref<4x3xf32, #tpu.memory_space<smem>>
    %71 = vector.extract_strided_slice %0 {offsets = [1, 0], sizes = [1, 128], strides = [1, 1]} : vector<3x128xf32> to vector<1x128xf32>
    %72 = vector.broadcast %70 : f32 to vector<1x128xf32>
    %73 = arith.mulf %72, %71 : vector<1x128xf32>
    %74 = arith.addf %69, %73 : vector<1x128xf32>
    %c2_28 = arith.constant 2 : index
    %c2_29 = arith.constant 2 : index
    %75 = memref.load %arg1[%c2_28, %c2_29] : memref<4x3xf32, #tpu.memory_space<smem>>
    %76 = vector.extract_strided_slice %0 {offsets = [2, 0], sizes = [1, 128], strides = [1, 1]} : vector<3x128xf32> to vector<1x128xf32>
    %77 = vector.broadcast %75 : f32 to vector<1x128xf32>
    %78 = arith.mulf %77, %76 : vector<1x128xf32>
    %79 = arith.addf %74, %78 : vector<1x128xf32>
    %80 = arith.negf %79 : vector<1x128xf32>
    %81 = math.exp %80 : vector<1x128xf32>
    %cst_30 = arith.constant 1.000000e+00 : f32
    %82 = vector.broadcast %cst_30 : f32 to vector<1x128xf32>
    %83 = arith.addf %82, %81 : vector<1x128xf32>
    %84 = arith.divf %82, %83 : vector<1x128xf32>
    %c0_31 = arith.constant 0 : index
    %c2_32 = arith.constant 2 : index
    %85 = memref.load %arg3[%c0_31, %c2_32] : memref<1x4xf32, #tpu.memory_space<smem>>
    %86 = vector.broadcast %85 : f32 to vector<1x128xf32>
    %87 = arith.mulf %86, %84 : vector<1x128xf32>
    %88 = arith.addf %60, %87 : vector<1x128xf32>
    %cst_33 = arith.constant 0.000000e+00 : f32
    %89 = vector.broadcast %cst_33 : f32 to vector<1x128xf32>
    %c3 = arith.constant 3 : index
    %90 = memref.load %arg2[%c3] : memref<4xf32, #tpu.memory_space<smem>>
    %91 = vector.broadcast %90 : f32 to vector<1x128xf32>
    %92 = arith.addf %89, %91 : vector<1x128xf32>
    %c3_34 = arith.constant 3 : index
    %c0_35 = arith.constant 0 : index
    %93 = memref.load %arg1[%c3_34, %c0_35] : memref<4x3xf32, #tpu.memory_space<smem>>
    %94 = vector.extract_strided_slice %0 {offsets = [0, 0], sizes = [1, 128], strides = [1, 1]} : vector<3x128xf32> to vector<1x128xf32>
    %95 = vector.broadcast %93 : f32 to vector<1x128xf32>
    %96 = arith.mulf %95, %94 : vector<1x128xf32>
    %97 = arith.addf %92, %96 : vector<1x128xf32>
    %c3_36 = arith.constant 3 : index
    %c1_37 = arith.constant 1 : index
    %98 = memref.load %arg1[%c3_36, %c1_37] : memref<4x3xf32, #tpu.memory_space<smem>>
    %99 = vector.extract_strided_slice %0 {offsets = [1, 0], sizes = [1, 128], strides = [1, 1]} : vector<3x128xf32> to vector<1x128xf32>
    %100 = vector.broadcast %98 : f32 to vector<1x128xf32>
    %101 = arith.mulf %100, %99 : vector<1x128xf32>
    %102 = arith.addf %97, %101 : vector<1x128xf32>
    %c3_38 = arith.constant 3 : index
    %c2_39 = arith.constant 2 : index
    %103 = memref.load %arg1[%c3_38, %c2_39] : memref<4x3xf32, #tpu.memory_space<smem>>
    %104 = vector.extract_strided_slice %0 {offsets = [2, 0], sizes = [1, 128], strides = [1, 1]} : vector<3x128xf32> to vector<1x128xf32>
    %105 = vector.broadcast %103 : f32 to vector<1x128xf32>
    %106 = arith.mulf %105, %104 : vector<1x128xf32>
    %107 = arith.addf %102, %106 : vector<1x128xf32>
    %108 = arith.negf %107 : vector<1x128xf32>
    %109 = math.exp %108 : vector<1x128xf32>
    %cst_40 = arith.constant 1.000000e+00 : f32
    %110 = vector.broadcast %cst_40 : f32 to vector<1x128xf32>
    %111 = arith.addf %110, %109 : vector<1x128xf32>
    %112 = arith.divf %110, %111 : vector<1x128xf32>
    %c0_41 = arith.constant 0 : index
    %c3_42 = arith.constant 3 : index
    %113 = memref.load %arg3[%c0_41, %c3_42] : memref<1x4xf32, #tpu.memory_space<smem>>
    %114 = vector.broadcast %113 : f32 to vector<1x128xf32>
    %115 = arith.mulf %114, %112 : vector<1x128xf32>
    %116 = arith.addf %88, %115 : vector<1x128xf32>
    %117 = arith.negf %116 : vector<1x128xf32>
    %118 = math.exp %117 : vector<1x128xf32>
    %cst_43 = arith.constant 1.000000e+00 : f32
    %119 = vector.broadcast %cst_43 : f32 to vector<1x128xf32>
    %120 = arith.addf %119, %118 : vector<1x128xf32>
    %121 = arith.divf %119, %120 : vector<1x128xf32>
    %c0_44 = arith.constant 0 : index
    %c0_45 = arith.constant 0 : index
    %122 = vector.load %arg6[%c0_44, %c0_45] : memref<1x128xf32, #tpu.memory_space<vmem>>, vector<1x128xf32>
    tpu.vector_store %arg6[%c0_44, %c0_45], %121 {strides = array<i32>} : memref<1x128xf32, #tpu.memory_space<vmem>>, vector<1x128xf32>,
    return
  }
  func.func @transform_0(%arg0: i32) -> (i32, i32) {
    %c0_i32 = arith.constant 0 : i32
    %c0_i32_0 = arith.constant 0 : i32
    %c0_i32_1 = arith.constant 0 : i32
    return %c0_i32, %c0_i32_0 : i32, i32
  }
  func.func @transform_1(%arg0: i32) -> i32 {
    %c0_i32 = arith.constant 0 : i32
    %c0_i32_0 = arith.constant 0 : i32
    return %c0_i32 : i32
  }
  func.func @transform_2(%arg0: i32) -> (i32, i32) {
    %c0_i32 = arith.constant 0 : i32
    %c0_i32_0 = arith.constant 0 : i32
    %c0_i32_1 = arith.constant 0 : i32
    return %c0_i32, %c0_i32_0 : i32, i32
  }
  func.func @transform_3(%arg0: i32) -> i32 {
    %c0_i32 = arith.constant 0 : i32
    %c0_i32_0 = arith.constant 0 : i32
    return %c0_i32 : i32
  }
  func.func @transform_4(%arg0: i32) -> (i32, i32) {
    %c0_i32 = arith.constant 0 : i32
    %c0_i32_0 = arith.constant 0 : i32
    return %c0_i32, %arg0 : i32, i32
  }
  func.func @transform_5(%arg0: i32) -> (i32, i32) {
    %c0_i32 = arith.constant 0 : i32
    %c0_i32_0 = arith.constant 0 : i32
    return %c0_i32, %arg0 : i32, i32
  }
}

</mosaic_0001>

<llo_original>
// kernel: tpu_custom_call.1
$region0: #{tpu_custom_call.1}
  #allocation0 [shape = 'u32[]', space=smem, size = 0x4, offset = 0x4, fixed_abs, tag = 'smem constant byte address 0x4 - core index']
  #allocation1 [shape = 'u32[72,128]{1,0:T(1,128)}', space=vmem, size = 0x9000, scoped, tag = 'internal scratch']
  #allocation2 [shape = 'f32[1]{0:T(128)S(6)}', space=smem, size = 0x200, scoped, tag = 'scoped memory for tpu_custom_call.1']
  %s0 = inlined_call_operand.hbm [shape: f32[4,3], index: 0, kind: input, shape index: {}]
  %s1 = inlined_call_operand.hbm [shape: f32[4], index: 1, kind: input, shape index: {}]
  %s2 = inlined_call_operand.hbm [shape: f32[1,4], index: 2, kind: input, shape index: {}]
  %s3 = inlined_call_operand.<no memory space> [shape: f32[1], index: 3, kind: input, shape index: {}]
  %s4 = inlined_call_operand.vmem [shape: f32[3,128], index: 4, kind: input, shape index: {}]
  %s5 = inlined_call_operand.hbm [shape: f32[1,128], index: 5, kind: output, shape index: {}]
  %s6 = sld [smem:[#allocation0]]
  $region42: #{tpu_custom_call.1} parent=0
    _
  %s8 = ssub.s32 1, %s6
  %s9 = scalar_select 0, %s8, %s6
  %10 = sst [smem:[#allocation2]] %s3
  $region1: #{tpu_custom_call.1} parent=0
    #allocation3 [shape = 'u8[2048]{0}', space=smem, size = 0x800, scoped, tag = 'input window, operand 0, single buffered']
    #allocation4 [shape = 's32[1]{0}', space=sflag, size = 0x4, scoped, tag = 'scoped memory for tpu_custom_call.1']
    #allocation5 [shape = 's32[1]{0}', space=sflag, size = 0x4, scoped, tag = 'scoped memory for tpu_custom_call.1']
    #allocation6 [shape = 'u8[512]{0}', space=smem, size = 0x200, scoped, tag = 'input window, operand 1, single buffered']
    #allocation7 [shape = 's32[1]{0}', space=sflag, size = 0x4, scoped, tag = 'scoped memory for tpu_custom_call.1']
    #allocation8 [shape = 'u8[512]{0}', space=smem, size = 0x200, scoped, tag = 'input window, operand 2, single buffered']
    #allocation9 [shape = 'u8[512]{0}', space=vmem, size = 0x400, scoped, tag = 'output window, operand 0, single buffered']
    %11 = vsyncpa [#allocation5], 0
    %12 = vsyncpa [#allocation7], 0
    %13 = vsyncpa [#allocation4], 0
    // Predicated region
    $region2: #{tpu_custom_call.1} parent=1 // pred_check
      _
    $region3: #{tpu_custom_call.1} parent=1 // pred_check_branch
      %15 = sbr.rel (0) target = $region5
    $region4: #{tpu_custom_call.1} parent=1 // pred_region
      %17 = vsyncadd [#allocation5], 0
      %s19 = sshll.u32 %s0, 4
      %s20 = int_to_ptr.hbm [resolvable:$true] %s19
      %22 = dma.hbm_to_smem %s20, 64, [#allocation3], [#allocation5]
    $region5: #{tpu_custom_call.1} parent=1 // pred_fallthru
      _
    // Predicated region
    $region6: #{tpu_custom_call.1} parent=1 // pred_check
      _
    $region7: #{tpu_custom_call.1} parent=1 // pred_check_branch
      %24 = sbr.rel (0) target = $region9
    $region8: #{tpu_custom_call.1} parent=1 // pred_region
      %26 = vsyncadd [#allocation7], 0
      %s28 = sshll.u32 %s1, 4
      %s29 = int_to_ptr.hbm [resolvable:$true] %s28
      %31 = dma.hbm_to_smem %s29, 16, [#allocation6], [#allocation7]
    $region9: #{tpu_custom_call.1} parent=1 // pred_fallthru
      _
    // Predicated region
    $region10: #{tpu_custom_call.1} parent=1 // pred_check
      _
    $region11: #{tpu_custom_call.1} parent=1 // pred_check_branch
      %33 = sbr.rel (0) target = $region13
    $region12: #{tpu_custom_call.1} parent=1 // pred_region
      %35 = vsyncadd [#allocation7], 0
      %s37 = sshll.u32 %s2, 4
      %s38 = int_to_ptr.hbm [resolvable:$true] %s37
      %40 = dma.hbm_to_smem %s38, 16, [#allocation8], [#allocation7]
    $region13: #{tpu_custom_call.1} parent=1 // pred_fallthru
      _
    // Predicated region
    $region14: #{tpu_custom_call.1} parent=1 // pred_check
      _
    $region15: #{tpu_custom_call.1} parent=1 // pred_check_branch
      %42 = sbr.rel (0) target = $region17
    $region16: #{tpu_custom_call.1} parent=1 // pred_region
      _
    $region17: #{tpu_custom_call.1} parent=1 // pred_fallthru
      _
    // Predicated region
    $region18: #{tpu_custom_call.1} parent=1 // pred_check
      _
    $region19: #{tpu_custom_call.1} parent=1 // pred_check_branch
      %44 = sbr.rel (0) target = $region21
    $region20: #{tpu_custom_call.1} parent=1 // pred_region
      _
    $region21: #{tpu_custom_call.1} parent=1 // pred_fallthru
      _
    // Predicated region
    $region22: #{tpu_custom_call.1} parent=1 // pred_check
      _
    $region23: #{tpu_custom_call.1} parent=1 // pred_check_branch
      %46 = sbr.rel (0) target = $region25
    $region24: #{tpu_custom_call.1} parent=1 // pred_region
      %48 = dma.done [#allocation5], 64
    $region25: #{tpu_custom_call.1} parent=1 // pred_fallthru
      _
    // Predicated region
    $region26: #{tpu_custom_call.1} parent=1 // pred_check
      _
    $region27: #{tpu_custom_call.1} parent=1 // pred_check_branch
      %50 = sbr.rel (0) target = $region29
    $region28: #{tpu_custom_call.1} parent=1 // pred_region
      %52 = dma.done [#allocation7], 16
    $region29: #{tpu_custom_call.1} parent=1 // pred_fallthru
      _
    // Predicated region
    $region30: #{tpu_custom_call.1} parent=1 // pred_check
      _
    $region31: #{tpu_custom_call.1} parent=1 // pred_check_branch
      %54 = sbr.rel (0) target = $region33
    $region32: #{tpu_custom_call.1} parent=1 // pred_region
      %56 = dma.done [#allocation7], 16
    $region33: #{tpu_custom_call.1} parent=1 // pred_fallthru
      _
    %57 = sfence
    %v58 = vld [vmem:[%s4] sm:$0x7]
    %s59 = sld [smem:[#allocation2]]
    %v60 = vstv %s59
    %v61 = vadd.f32 %v60, 0.0
    %s62 = sld [smem:[#allocation6]]
    %v63 = vstv %s62
    %v64 = vadd.f32 %v63, 0.0
    %s65 = sld [smem:[#allocation3]]
    %v66 = vstv %s65
    %v67 = vmul.f32 %v66, %v58
    %v68 = vadd.f32 %v64, %v67
    %s69 = sld [smem:[#allocation3 + $0x1]]
    %v70 = vstv %s69
    %v71 = vmul.f32 %v70, %v58
    %v73 = vrot.slane %v71, 1
    %v75 = vadd.f32 %v68, %v73
    %s76 = sld [smem:[#allocation3 + $0x2]]
    %v77 = vstv %s76
    %v78 = vmul.f32 %v77, %v58
    %v80 = vrot.slane %v78, 2
    %v82 = vadd.f32 %v75, %v80
    %v83 = vxor.u32 %v82, 2147483648
    %v84 = vmul.f32 %v83, 1.442695
    %v85 = vpow.pop %v84
    %v86 = vadd.f32 %v85, 1.0
    %v87 = vrcp.pop %v86
    %v88 = vmul.f32 %v86, %v87
    %v89 = vsub.f32 1.0, %v88
    %v90 = vmul.f32 %v87, %v89
    %v91 = vadd.f32 %v87, %v90
    %vm92 = vweird.f32 %v86
    %vm93 = vweird.f32 %v87
    %vm94 = vmor %vm92, %vm93
    %v95 = vsel %vm94, %v87, %v91
    %v96 = vand.u32 2147483647, %v86
    %vm97 = vcmp.eq.f32.partialorder %v96, 8.507059e+37
    %v98 = vand.u32 %v86, 2147483648
    %v99 = vor.u32 1.1754944e-38, %v98
    %v100 = vsel %vm97, %v99, %v95
    %v101 = vmul.f32 1.0, %v100
    %s102 = sld [smem:[#allocation8]]
    %v103 = vstv %s102
    %v104 = vmul.f32 %v103, %v101
    %v105 = vadd.f32 %v61, %v104
    %s106 = sld [smem:[#allocation6 + $0x1]]
    %v107 = vstv %s106
    %v108 = vadd.f32 %v107, 0.0
    %s109 = sld [smem:[#allocation3 + $0x80]]
    %v110 = vstv %s109
    %v111 = vmul.f32 %v110, %v58
    %v112 = vadd.f32 %v108, %v111
    %s113 = sld [smem:[#allocation3 + $0x81]]
    %v114 = vstv %s113
    %v115 = vmul.f32 %v114, %v58
    %v117 = vrot.slane %v115, 1
    %v119 = vadd.f32 %v112, %v117
    %s120 = sld [smem:[#allocation3 + $0x82]]
    %v121 = vstv %s120
    %v122 = vmul.f32 %v121, %v58
    %v124 = vrot.slane %v122, 2
    %v126 = vadd.f32 %v119, %v124
    %v127 = vxor.u32 %v126, 2147483648
    %v128 = vmul.f32 %v127, 1.442695
    %v129 = vpow.pop %v128
    %v130 = vadd.f32 %v129, 1.0
    %v131 = vrcp.pop %v130
    %v132 = vmul.f32 %v130, %v131
    %v133 = vsub.f32 1.0, %v132
    %v134 = vmul.f32 %v131, %v133
    %v135 = vadd.f32 %v131, %v134
    %vm136 = vweird.f32 %v130
    %vm137 = vweird.f32 %v131
    %vm138 = vmor %vm136, %vm137
    %v139 = vsel %vm138, %v131, %v135
    %v140 = vand.u32 2147483647, %v130
    %vm141 = vcmp.eq.f32.partialorder %v140, 8.507059e+37
    %v142 = vand.u32 %v130, 2147483648
    %v143 = vor.u32 1.1754944e-38, %v142
    %v144 = vsel %vm141, %v143, %v139
    %v145 = vmul.f32 1.0, %v144
    %s146 = sld [smem:[#allocation8 + $0x1]]
    %v147 = vstv %s146
    %v148 = vmul.f32 %v147, %v145
    %v149 = vadd.f32 %v105, %v148
    %s150 = sld [smem:[#allocation6 + $0x2]]
    %v151 = vstv %s150
    %v152 = vadd.f32 %v151, 0.0
    %s153 = sld [smem:[#allocation3 + $0x100]]
    %v154 = vstv %s153
    %v155 = vmul.f32 %v154, %v58
    %v156 = vadd.f32 %v152, %v155
    %s157 = sld [smem:[#allocation3 + $0x101]]
    %v158 = vstv %s157
    %v159 = vmul.f32 %v158, %v58
    %v161 = vrot.slane %v159, 1
    %v163 = vadd.f32 %v156, %v161
    %s164 = sld [smem:[#allocation3 + $0x102]]
    %v165 = vstv %s164
    %v166 = vmul.f32 %v165, %v58
    %v168 = vrot.slane %v166, 2
    %v170 = vadd.f32 %v163, %v168
    %v171 = vxor.u32 %v170, 2147483648
    %v172 = vmul.f32 %v171, 1.442695
    %v173 = vpow.pop %v172
    %v174 = vadd.f32 %v173, 1.0
    %v175 = vrcp.pop %v174
    %v176 = vmul.f32 %v174, %v175
    %v177 = vsub.f32 1.0, %v176
    %v178 = vmul.f32 %v175, %v177
    %v179 = vadd.f32 %v175, %v178
    %vm180 = vweird.f32 %v174
    %vm181 = vweird.f32 %v175
    %vm182 = vmor %vm180, %vm181
    %v183 = vsel %vm182, %v175, %v179
    %v184 = vand.u32 2147483647, %v174
    %vm185 = vcmp.eq.f32.partialorder %v184, 8.507059e+37
    %v186 = vand.u32 %v174, 2147483648
    %v187 = vor.u32 1.1754944e-38, %v186
    %v188 = vsel %vm185, %v187, %v183
    %v189 = vmul.f32 1.0, %v188
    %s190 = sld [smem:[#allocation8 + $0x2]]
    %v191 = vstv %s190
    %v192 = vmul.f32 %v191, %v189
    %v193 = vadd.f32 %v149, %v192
    %s194 = sld [smem:[#allocation6 + $0x3]]
    %v195 = vstv %s194
    %v196 = vadd.f32 %v195, 0.0
    %s197 = sld [smem:[#allocation3 + $0x180]]
    %v198 = vstv %s197
    %v199 = vmul.f32 %v198, %v58
    %v200 = vadd.f32 %v196, %v199
    %s201 = sld [smem:[#allocation3 + $0x181]]
    %v202 = vstv %s201
    %v203 = vmul.f32 %v202, %v58
    %v205 = vrot.slane %v203, 1
    %v207 = vadd.f32 %v200, %v205
    %s208 = sld [smem:[#allocation3 + $0x182]]
    %v209 = vstv %s208
    %v210 = vmul.f32 %v209, %v58
    %v212 = vrot.slane %v210, 2
    %v214 = vadd.f32 %v207, %v212
    %v215 = vxor.u32 %v214, 2147483648
    %v216 = vmul.f32 %v215, 1.442695
    %v217 = vpow.pop %v216
    %v218 = vadd.f32 %v217, 1.0
    %v219 = vrcp.pop %v218
    %v220 = vmul.f32 %v218, %v219
    %v221 = vsub.f32 1.0, %v220
    %v222 = vmul.f32 %v219, %v221
    %v223 = vadd.f32 %v219, %v222
    %vm224 = vweird.f32 %v218
    %vm225 = vweird.f32 %v219
    %vm226 = vmor %vm224, %vm225
    %v227 = vsel %vm226, %v219, %v223
    %v228 = vand.u32 2147483647, %v218
    %vm229 = vcmp.eq.f32.partialorder %v228, 8.507059e+37
    %v230 = vand.u32 %v218, 2147483648
    %v231 = vor.u32 1.1754944e-38, %v230
    %v232 = vsel %vm229, %v231, %v227
    %v233 = vmul.f32 1.0, %v232
    %s234 = sld [smem:[#allocation8 + $0x3]]
    %v235 = vstv %s234
    %v236 = vmul.f32 %v235, %v233
    %v237 = vadd.f32 %v193, %v236
    %v238 = vxor.u32 %v237, 2147483648
    %v239 = vmul.f32 %v238, 1.442695
    %v240 = vpow.pop %v239
    %v241 = vadd.f32 %v240, 1.0
    %v242 = vrcp.pop %v241
    %v243 = vmul.f32 %v241, %v242
    %v244 = vsub.f32 1.0, %v243
    %v245 = vmul.f32 %v242, %v244
    %v246 = vadd.f32 %v242, %v245
    %vm247 = vweird.f32 %v241
    %vm248 = vweird.f32 %v242
    %vm249 = vmor %vm247, %vm248
    %v250 = vsel %vm249, %v242, %v246
    %v251 = vand.u32 2147483647, %v241
    %vm252 = vcmp.eq.f32.partialorder %v251, 8.507059e+37
    %v253 = vand.u32 %v241, 2147483648
    %v254 = vor.u32 1.1754944e-38, %v253
    %v255 = vsel %vm252, %v254, %v250
    %v256 = vmul.f32 1.0, %v255
    %257 = vst [vmem:[#allocation9] sm:$0x1] %v256
    // Predicated region
    $region34: #{tpu_custom_call.1} parent=1 // pred_check
      _
    $region35: #{tpu_custom_call.1} parent=1 // pred_check_branch
      %259 = sbr.rel (0) target = $region37
    $region36: #{tpu_custom_call.1} parent=1 // pred_region
      %261 = vsyncadd [#allocation4], 0
      %s263 = sshll.u32 [#allocation9], 4
      %s264 = int_to_ptr.vmem [resolvable:$true] %s263
      %s265 = sshll.u32 %s5, 4
      %s266 = int_to_ptr.hbm [resolvable:$true] %s265
      %268 = dma.vmem_to_hbm [thread:$0]  %s264, 16, %s266, [#allocation4]
    $region37: #{tpu_custom_call.1} parent=1 // pred_fallthru
      _
    // Predicated region
    $region38: #{tpu_custom_call.1} parent=1 // pred_check
      _
    $region39: #{tpu_custom_call.1} parent=1 // pred_check_branch
      %270 = sbr.rel (0) target = $region41
    $region40: #{tpu_custom_call.1} parent=1 // pred_region
      %272 = dma.done [#allocation4], 16
    $region41: #{tpu_custom_call.1} parent=1 // pred_fallthru
      _
    %273 = vsyncpa [#allocation4], 1
    %274 = vsyncpa [#allocation5], 1
    %275 = vsyncpa [#allocation7], 1

</llo_original>
